<compile_context>
chip_gen: v7x
topology: tpu7x:2x2x1
jax: 0.10.0
libtpu: 0.0.40
codegen_flags: <defaults>
</compile_context>

<pallas_src>
import functools
import math
import struct

import jax
import jax.numpy as jnp
from jax import lax
from jax.experimental import pallas as pl
from jax.experimental.pallas import tpu as pltpu


_N_BISECT = 32            # resolves the full [key(-inf), key(+inf)] range exactly
_MANT = 0x7FFFFFFF
_LANES = 128


def _float_key(v):
    """Order-preserving int32 key of a python float (host-side helper)."""
    bits = struct.unpack("<i", struct.pack("<f", float(v)))[0]
    return bits ^ (_MANT if bits < 0 else 0)


_KEY_NEG_INF = _float_key(float("-inf"))   # -2139095041
_KEY_POS_INF = _float_key(float("inf"))    #  2139095040


def _key_to_f32(k):
    """Inverse of the order-preserving transform (involution) on small int32 arrays."""
    bits = k ^ ((k >> 31) & jnp.int32(_MANT))
    return pltpu.bitcast(bits, jnp.float32)


def _mid_key(lo, hi):
    """floor((lo + hi) / 2) without int32 overflow."""
    return (lo >> 1) + (hi >> 1) + (lo & hi & jnp.int32(1))


def _epilogue(low_ref, high_ref, out_low_ref, out_high_ref, out_scale_ref,
              v_ll, v_lh, v_hl, v_hh, frac_low, frac_high, decay, min_):
    """Interpolation + EMA update + inverse-scale, all on (1,1) f32 tiles."""
    if frac_low == 0.0:
        ql = v_ll
    else:
        ql = v_ll + (v_lh - v_ll) * jnp.float32(frac_low)
    if frac_high == 0.0:
        qh = v_hl
    else:
        qh = v_hl + (v_hh - v_hl) * jnp.float32(frac_high)
    d = jnp.float32(decay)
    one = jnp.float32(1.0)
    new_low = d * low_ref[...] + (one - d) * ql
    new_high = d * high_ref[...] + (one - d) * qh
    out_low_ref[...] = new_low
    out_high_ref[...] = new_high
    out_scale_ref[...] = jnp.maximum(jnp.float32(min_), new_high - new_low)


# ----------------------------------------------------------------------------
# Fast path: data resident in VMEM, all 32 passes run over the resident buffer.
# ----------------------------------------------------------------------------
def _moments_resident_kernel(low_ref, high_ref, x_ref,
                             out_low_ref, out_high_ref, out_scale_ref,
                             *, n_full_chunks, chunk_rows, tail_rows, ranks,
                             frac_low, frac_high, decay, min_):
    lanes = x_ref.shape[1]

    def count_le(mids_f):
        """count(x <= mid) for the 4 (1,1) f32 thresholds -> list of (1,1) int32."""

        def add_chunk(xb, accs):
            new = []
            for r in range(4):
                mask = (xb <= mids_f[r]).astype(jnp.int32)
                # deferred reduction: per-lane partial sums only (sublane adds)
                new.append(accs[r] + jnp.sum(mask, axis=0, keepdims=True))
            return tuple(new)

        accs = tuple(jnp.zeros((1, lanes), jnp.int32) for _ in range(4))
        if n_full_chunks > 0:
            def body(c, accs):
                off = pl.multiple_of(c * chunk_rows, chunk_rows)
                return add_chunk(x_ref[pl.ds(off, chunk_rows), :], accs)
            accs = lax.fori_loop(0, n_full_chunks, body, accs)
        if tail_rows > 0:
            accs = add_chunk(
                x_ref[pl.ds(n_full_chunks * chunk_rows, tail_rows), :], accs)
        # single cross-lane reduction per rank per pass
        return [jnp.sum(a, keepdims=True) for a in accs]

    def pass_body(_, carry):
        los, his = carry[:4], carry[4:]
        mids = [_mid_key(l, h) for l, h in zip(los, his)]
        counts = count_le([_key_to_f32(m) for m in mids])
        new_lo, new_hi = [], []
        for r, k in enumerate(ranks):
            found = counts[r] >= jnp.int32(k + 1)       # count_le(mid) >= k+1
            new_hi.append(jnp.where(found, mids[r], his[r]))
            new_lo.append(jnp.where(found, los[r], mids[r] + jnp.int32(1)))
        return tuple(new_lo) + tuple(new_hi)

    init = (tuple(jnp.full((1, 1), _KEY_NEG_INF, jnp.int32) for _ in range(4))
            + tuple(jnp.full((1, 1), _KEY_POS_INF, jnp.int32) for _ in range(4)))
    final = lax.fori_loop(0, _N_BISECT, pass_body, init)

    v = [_key_to_f32(final[4 + r]) for r in range(4)]   # converged keys -> floats
    _epilogue(low_ref, high_ref, out_low_ref, out_high_ref, out_scale_ref,
              v[0], v[1], v[2], v[3], frac_low, frac_high, decay, min_)


# ----------------------------------------------------------------------------
# Fallback path: data streamed from HBM over a (pass, block) grid.
# ----------------------------------------------------------------------------
def _moments_stream_kernel(low_ref, high_ref, x_ref,
                           out_low_ref, out_high_ref, out_scale_ref,
                           lo_ref, hi_ref, cnt_ref,
                           *, ranks, valid_rows_last, frac_low, frac_high,
                           decay, min_):
    p = pl.program_id(0)                 # bisection pass        (sequential)
    b = pl.program_id(1)                 # data block within pass (sequential)
    last_p = pl.num_programs(0) - 1
    last_b = pl.num_programs(1) - 1
    block_rows = x_ref.shape[0]

    @pl.when(jnp.logical_and(p == 0, b == 0))
    def _init():
        for r in range(4):
            lo_ref[r] = jnp.full((1, 1), _KEY_NEG_INF, jnp.int32)
            hi_ref[r] = jnp.full((1, 1), _KEY_POS_INF, jnp.int32)

    @pl.when(b == 0)
    def _reset():
        cnt_ref[...] = jnp.zeros_like(cnt_ref)

    xb = x_ref[...]
    for r in range(4):
        # mid is a (1,1)-sized op per block -> negligible vs. the block compares
        mid_f = _key_to_f32(_mid_key(lo_ref[r], hi_ref[r]))
        mask = (xb <= mid_f).astype(jnp.int32)
        # deferred reduction: per-lane int32 partial counts, lane-reduce at b==last_b
        contrib = jnp.sum(mask[:valid_rows_last], axis=0, keepdims=True)
        if valid_rows_last < block_rows:
            # Rows past `valid_rows_last` hold real data on every block except the
            # final (ragged) one, where the DMA'd contents are unspecified.
            tail = jnp.sum(mask[valid_rows_last:], axis=0, keepdims=True)
            contrib = contrib + jnp.where(b != last_b, tail, jnp.zeros_like(tail))
        cnt_ref[r] = cnt_ref[r] + contrib

    @pl.when(b == last_b)
    def _update():
        for r, k in enumerate(ranks):
            lo = lo_ref[r]
            hi = hi_ref[r]
            mid = _mid_key(lo, hi)
            total = jnp.sum(cnt_ref[r], keepdims=True)       # (1,1) int32
            found = total >= jnp.int32(k + 1)
            hi_ref[r] = jnp.where(found, mid, hi)
            lo_ref[r] = jnp.where(found, lo, mid + jnp.int32(1))

    @pl.when(jnp.logical_and(p == last_p, b == last_b))
    def _final():
        v = [_key_to_f32(hi_ref[r]) for r in range(4)]
        _epilogue(low_ref, high_ref, out_low_ref, out_high_ref, out_scale_ref,
                  v[0], v[1], v[2], v[3], frac_low, frac_high, decay, min_)


# ----------------------------------------------------------------------------
# Host-side wrapper
# ----------------------------------------------------------------------------
def _default_resident_limit_bytes():
    """Generation-aware residency threshold (conservative fallback = v7x 64 MiB)."""
    vmem_bytes = 64 << 20
    try:
        info = pltpu.get_tpu_info()
        cap = getattr(info, "vmem_capacity_bytes", None)
        if cap:
            vmem_bytes = int(cap)
    except Exception:
        pass
    # data is budgeted ~2x (input buffering) + scratch/compiler slack
    return max(4 << 20, int(vmem_bytes * 0.35))


def moments_forward(x, low, high, *, decay=0.99, min_=1.0,
                    percentile_low=0.05, percentile_high=0.95,
                    resident_limit_bytes=None, stream_block_rows=4096,
                    chunk_rows=512):
    """Returns (new_low, new_high, inverse_scale) as f32 scalars."""
    xf = jnp.ravel(x).astype(jnp.float32)
    n = int(xf.shape[0])
    if n < 1:
        raise ValueError("Moments requires at least one element")

    rows = -(-n // _LANES)
    rows8 = -(-rows // 8) * 8                 # sublane-aligned row count
    total = rows8 * _LANES
    pad = total - n
    if pad:
        # TODO(synk): this small (< 1024-element) +inf pad still copies x once;
        #             could be removed entirely by masking the ragged tail in-kernel.
        xf = jnp.concatenate([xf, jnp.full((pad,), jnp.inf, jnp.float32)])
    x2d = xf.reshape(rows8, _LANES)

    # static rank / interpolation parameters (torch 'linear' interpolation)
    def rank_params(q):
        pos = q * (n - 1)
        k_lo = int(math.floor(pos))
        k_hi = min(k_lo + 1, n - 1)
        return k_lo, k_hi, float(pos - k_lo)

    kl_lo, kl_hi, frac_low = rank_params(float(percentile_low))
    kh_lo, kh_hi, frac_high = rank_params(float(percentile_high))
    ranks = (kl_lo, kl_hi, kh_lo, kh_hi)

    low2 = jnp.asarray(low, jnp.float32).reshape(1, 1)
    high2 = jnp.asarray(high, jnp.float32).reshape(1, 1)

    out_shape = (jax.ShapeDtypeStruct((1, 1), jnp.float32),) * 3
    data_bytes = total * 4
    if resident_limit_bytes is None:
        resident_limit_bytes = _default_resident_limit_bytes()

    if data_bytes <= resident_limit_bytes:
        # --------- VMEM-resident path: one HBM read, 32 in-kernel passes ----------
        cr = max(8, (min(chunk_rows, rows8) // 8) * 8)
        n_full = rows8 // cr
        tail = rows8 - n_full * cr            # multiple of 8
        kernel = functools.partial(
            _moments_resident_kernel, n_full_chunks=n_full, chunk_rows=cr,
            tail_rows=tail, ranks=ranks, frac_low=frac_low, frac_high=frac_high,
            decay=float(decay), min_=float(min_))
        vmem_limit = max(16 << 20, min(2 * data_bytes + (4 << 20), 120 << 20))
        outs = pl.pallas_call(
            kernel,
            grid=(1,),
            in_specs=[
                pl.BlockSpec((1, 1), lambda i: (0, 0)),              # low EMA
                pl.BlockSpec((1, 1), lambda i: (0, 0)),              # high EMA
                pl.BlockSpec((rows8, _LANES), lambda i: (0, 0)),     # resident data
            ],
            out_specs=(pl.BlockSpec((1, 1), lambda i: (0, 0)),) * 3,
            out_shape=out_shape,
            compiler_params=pltpu.CompilerParams(
                dimension_semantics=("arbitrary",),
                vmem_limit_bytes=vmem_limit,
            ),
        )(low2, high2, x2d)
    else:
        # --------- streaming path: (pass, block) grid, 2 MiB blocks ---------------
        block_rows = max(8, (min(stream_block_rows, rows8) // 8) * 8)
        n_blocks = -(-rows8 // block_rows)
        valid_rows_last = rows8 - (n_blocks - 1) * block_rows   # multiple of 8
        kernel = functools.partial(
            _moments_stream_kernel, ranks=ranks, valid_rows_last=valid_rows_last,
            frac_low=frac_low, frac_high=frac_high,
            decay=float(decay), min_=float(min_))
        block_bytes = block_rows * _LANES * 4
        vmem_limit = max(16 << 20, min(4 * block_bytes + (4 << 20), 120 << 20))
        outs = pl.pallas_call(
            kernel,
            grid=(_N_BISECT, n_blocks),
            in_specs=[
                pl.BlockSpec((1, 1), lambda p, b: (0, 0)),                  # low EMA
                pl.BlockSpec((1, 1), lambda p, b: (0, 0)),                  # high EMA
                pl.BlockSpec((block_rows, _LANES), lambda p, b: (b, 0)),    # data
            ],
            out_specs=(pl.BlockSpec((1, 1), lambda p, b: (0, 0)),) * 3,
            out_shape=out_shape,
            scratch_shapes=[
                pltpu.VMEM((4, 1, 1), jnp.int32),        # lo bracket per rank
                pltpu.VMEM((4, 1, 1), jnp.int32),        # hi bracket per rank
                pltpu.VMEM((4, 1, _LANES), jnp.int32),   # per-lane running counts
            ],
            compiler_params=pltpu.CompilerParams(
                # both axes carry sequential state (brackets / running counts)
                dimension_semantics=("arbitrary", "arbitrary"),
                vmem_limit_bytes=vmem_limit,
            ),
        )(low2, high2, x2d)

    new_low, new_high, inv_scale = outs
    return new_low[0, 0], new_high[0, 0], inv_scale[0, 0]


class Moments:
    """JAX/Pallas port of the PyTorch Moments module (stateful EMA buffers)."""

    def __init__(self, decay=0.99, min_=1, percentileLow=0.05, percentileHigh=0.95):
        self._decay = float(decay)
        self._min = float(min_)
        self._pLow = float(percentileLow)
        self._pHigh = float(percentileHigh)
        self.low = jnp.zeros((), jnp.float32)
        self.high = jnp.zeros((), jnp.float32)

    def __call__(self, x):
        new_low, new_high, inv_scale = moments_forward(
            x, self.low, self.high, decay=self._decay, min_=self._min,
            percentile_low=self._pLow, percentile_high=self._pHigh)
        self.low = new_low
        self.high = new_high
        return self.low, inv_scale


if __name__ == "__main__":
    key = jax.random.PRNGKey(0)
    x = jax.random.normal(key, (2, 4, 16, 16), dtype=jnp.float32)

    decay, min_ = 0.99, 1.0
    ref_low_q = jnp.quantile(x.ravel(), 0.05)
    ref_high_q = jnp.quantile(x.ravel(), 0.95)

    m = Moments()
    low, inv_scale = m(x)
    jax.block_until_ready((low, inv_scale))

    ref_low = (1 - decay) * ref_low_q
    ref_high = (1 - decay) * ref_high_q
    ref_scale = jnp.maximum(min_, ref_high - ref_low)
    assert jnp.allclose(low, ref_low, atol=1e-4, rtol=1e-4), (low, ref_low)
    assert jnp.allclose(inv_scale, ref_scale, atol=1e-4, rtol=1e-4), (inv_scale, ref_scale)

    # second call exercises the EMA state path
    low2, inv2 = m(x)
    jax.block_until_ready((low2, inv2))
    ref_low2 = decay * ref_low + (1 - decay) * ref_low_q
    ref_high2 = decay * ref_high + (1 - decay) * ref_high_q
    ref_scale2 = jnp.maximum(min_, ref_high2 - ref_low2)
    assert jnp.allclose(low2, ref_low2, atol=1e-4, rtol=1e-4), (low2, ref_low2)
    assert jnp.allclose(inv2, ref_scale2, atol=1e-4, rtol=1e-4), (inv2, ref_scale2)

    # exercise the HBM-streaming fallback as well (forced via a zero threshold)
    s_low, s_high, s_scale = moments_forward(
        x, jnp.zeros((), jnp.float32), jnp.zeros((), jnp.float32),
        decay=decay, min_=min_, resident_limit_bytes=0)
    jax.block_until_ready((s_low, s_high, s_scale))
    assert jnp.allclose(s_low, ref_low, atol=1e-4, rtol=1e-4), (s_low, ref_low)
    assert jnp.allclose(s_high, ref_high, atol=1e-4, rtol=1e-4), (s_high, ref_high)
    assert jnp.allclose(s_scale, ref_scale, atol=1e-4, rtol=1e-4), (s_scale, ref_scale)

    print("KERNEL_OK")
</pallas_src>

<mosaic_0001>
module attributes {stable_mosaic.version = 11 : i64} {
  func.func @_moments_resident_kernel(%arg0: i32, %arg1: memref<1x1xf32, #tpu.memory_space<vmem>>, %arg2: memref<1x1xf32, #tpu.memory_space<vmem>>, %arg3: memref<16x128xf32, #tpu.memory_space<vmem>>, %arg4: memref<1x1xf32, #tpu.memory_space<vmem>>, %arg5: memref<1x1xf32, #tpu.memory_space<vmem>>, %arg6: memref<1x1xf32, #tpu.memory_space<vmem>>) attributes {dimension_semantics = [#tpu.dimension_semantics<arbitrary>], iteration_bounds = array<i64: 1>, scalar_prefetch = 0 : i64, scratch_operands = 0 : i64, tpu.core_type = #tpu.core_type<tc>, window_params = [{pipeline_mode = #tpu.pipeline_mode<synchronous>, transform_indices = @transform_0, window_bounds = array<i64: 1, 1>}, {pipeline_mode = #tpu.pipeline_mode<synchronous>, transform_indices = @transform_1, window_bounds = array<i64: 1, 1>}, {pipeline_mode = #tpu.pipeline_mode<synchronous>, transform_indices = @transform_2, window_bounds = array<i64: 16, 128>}, {pipeline_mode = #tpu.pipeline_mode<synchronous>, transform_indices = @transform_3, window_bounds = array<i64: 1, 1>}, {pipeline_mode = #tpu.pipeline_mode<synchronous>, transform_indices = @transform_4, window_bounds = array<i64: 1, 1>}, {pipeline_mode = #tpu.pipeline_mode<synchronous>, transform_indices = @transform_5, window_bounds = array<i64: 1, 1>}]} {
    %c-2139095041_i32 = arith.constant -2139095041 : i32
    %0 = vector.broadcast %c-2139095041_i32 : i32 to vector<1x1xi32>
    %c-2139095041_i32_0 = arith.constant -2139095041 : i32
    %1 = vector.broadcast %c-2139095041_i32_0 : i32 to vector<1x1xi32>
    %c-2139095041_i32_1 = arith.constant -2139095041 : i32
    %2 = vector.broadcast %c-2139095041_i32_1 : i32 to vector<1x1xi32>
    %c-2139095041_i32_2 = arith.constant -2139095041 : i32
    %3 = vector.broadcast %c-2139095041_i32_2 : i32 to vector<1x1xi32>
    %c2139095040_i32 = arith.constant 2139095040 : i32
    %4 = vector.broadcast %c2139095040_i32 : i32 to vector<1x1xi32>
    %c2139095040_i32_3 = arith.constant 2139095040 : i32
    %5 = vector.broadcast %c2139095040_i32_3 : i32 to vector<1x1xi32>
    %c2139095040_i32_4 = arith.constant 2139095040 : i32
    %6 = vector.broadcast %c2139095040_i32_4 : i32 to vector<1x1xi32>
    %c2139095040_i32_5 = arith.constant 2139095040 : i32
    %7 = vector.broadcast %c2139095040_i32_5 : i32 to vector<1x1xi32>
    %c0_i32 = arith.constant 0 : i32
    %c32_i32 = arith.constant 32 : i32
    %8 = arith.addi %c0_i32, %c32_i32 : i32
    %c1_i32 = arith.constant 1 : i32
    %9:8 = scf.for %arg7 = %c0_i32 to %8 step %c1_i32 iter_args(%arg8 = %0, %arg9 = %1, %arg10 = %2, %arg11 = %3, %arg12 = %4, %arg13 = %5, %arg14 = %6, %arg15 = %7) -> (vector<1x1xi32>, vector<1x1xi32>, vector<1x1xi32>, vector<1x1xi32>, vector<1x1xi32>, vector<1x1xi32>, vector<1x1xi32>, vector<1x1xi32>)  : i32 {
      %c1_i32_29 = arith.constant 1 : i32
      %62 = vector.broadcast %c1_i32_29 : i32 to vector<1x1xi32>
      %63 = arith.shrsi %arg8, %62 : vector<1x1xi32>
      %c1_i32_30 = arith.constant 1 : i32
      %64 = vector.broadcast %c1_i32_30 : i32 to vector<1x1xi32>
      %65 = arith.shrsi %arg12, %64 : vector<1x1xi32>
      %66 = arith.addi %63, %65 : vector<1x1xi32>
      %67 = arith.andi %arg8, %arg12 : vector<1x1xi32>
      %c1_i32_31 = arith.constant 1 : i32
      %68 = vector.broadcast %c1_i32_31 : i32 to vector<1x1xi32>
      %69 = arith.andi %67, %68 : vector<1x1xi32>
      %70 = arith.addi %66, %69 : vector<1x1xi32>
      %c1_i32_32 = arith.constant 1 : i32
      %71 = vector.broadcast %c1_i32_32 : i32 to vector<1x1xi32>
      %72 = arith.shrsi %arg9, %71 : vector<1x1xi32>
      %c1_i32_33 = arith.constant 1 : i32
      %73 = vector.broadcast %c1_i32_33 : i32 to vector<1x1xi32>
      %74 = arith.shrsi %arg13, %73 : vector<1x1xi32>
      %75 = arith.addi %72, %74 : vector<1x1xi32>
      %76 = arith.andi %arg9, %arg13 : vector<1x1xi32>
      %c1_i32_34 = arith.constant 1 : i32
      %77 = vector.broadcast %c1_i32_34 : i32 to vector<1x1xi32>
      %78 = arith.andi %76, %77 : vector<1x1xi32>
      %79 = arith.addi %75, %78 : vector<1x1xi32>
      %c1_i32_35 = arith.constant 1 : i32
      %80 = vector.broadcast %c1_i32_35 : i32 to vector<1x1xi32>
      %81 = arith.shrsi %arg10, %80 : vector<1x1xi32>
      %c1_i32_36 = arith.constant 1 : i32
      %82 = vector.broadcast %c1_i32_36 : i32 to vector<1x1xi32>
      %83 = arith.shrsi %arg14, %82 : vector<1x1xi32>
      %84 = arith.addi %81, %83 : vector<1x1xi32>
      %85 = arith.andi %arg10, %arg14 : vector<1x1xi32>
      %c1_i32_37 = arith.constant 1 : i32
      %86 = vector.broadcast %c1_i32_37 : i32 to vector<1x1xi32>
      %87 = arith.andi %85, %86 : vector<1x1xi32>
      %88 = arith.addi %84, %87 : vector<1x1xi32>
      %c1_i32_38 = arith.constant 1 : i32
      %89 = vector.broadcast %c1_i32_38 : i32 to vector<1x1xi32>
      %90 = arith.shrsi %arg11, %89 : vector<1x1xi32>
      %c1_i32_39 = arith.constant 1 : i32
      %91 = vector.broadcast %c1_i32_39 : i32 to vector<1x1xi32>
      %92 = arith.shrsi %arg15, %91 : vector<1x1xi32>
      %93 = arith.addi %90, %92 : vector<1x1xi32>
      %94 = arith.andi %arg11, %arg15 : vector<1x1xi32>
      %c1_i32_40 = arith.constant 1 : i32
      %95 = vector.broadcast %c1_i32_40 : i32 to vector<1x1xi32>
      %96 = arith.andi %94, %95 : vector<1x1xi32>
      %97 = arith.addi %93, %96 : vector<1x1xi32>
      %c31_i32_41 = arith.constant 31 : i32
      %98 = vector.broadcast %c31_i32_41 : i32 to vector<1x1xi32>
      %99 = arith.shrsi %70, %98 : vector<1x1xi32>
      %c2147483647_i32_42 = arith.constant 2147483647 : i32
      %100 = vector.broadcast %c2147483647_i32_42 : i32 to vector<1x1xi32>
      %101 = arith.andi %99, %100 : vector<1x1xi32>
      %102 = arith.xori %70, %101 : vector<1x1xi32>
      %103 = tpu.bitcast %102 : vector<1x1xi32> -> vector<1x1xf32>
      %c31_i32_43 = arith.constant 31 : i32
      %104 = vector.broadcast %c31_i32_43 : i32 to vector<1x1xi32>
      %105 = arith.shrsi %79, %104 : vector<1x1xi32>
      %c2147483647_i32_44 = arith.constant 2147483647 : i32
      %106 = vector.broadcast %c2147483647_i32_44 : i32 to vector<1x1xi32>
      %107 = arith.andi %105, %106 : vector<1x1xi32>
      %108 = arith.xori %79, %107 : vector<1x1xi32>
      %109 = tpu.bitcast %108 : vector<1x1xi32> -> vector<1x1xf32>
      %c31_i32_45 = arith.constant 31 : i32
      %110 = vector.broadcast %c31_i32_45 : i32 to vector<1x1xi32>
      %111 = arith.shrsi %88, %110 : vector<1x1xi32>
      %c2147483647_i32_46 = arith.constant 2147483647 : i32
      %112 = vector.broadcast %c2147483647_i32_46 : i32 to vector<1x1xi32>
      %113 = arith.andi %111, %112 : vector<1x1xi32>
      %114 = arith.xori %88, %113 : vector<1x1xi32>
      %115 = tpu.bitcast %114 : vector<1x1xi32> -> vector<1x1xf32>
      %c31_i32_47 = arith.constant 31 : i32
      %116 = vector.broadcast %c31_i32_47 : i32 to vector<1x1xi32>
      %117 = arith.shrsi %97, %116 : vector<1x1xi32>
      %c2147483647_i32_48 = arith.constant 2147483647 : i32
      %118 = vector.broadcast %c2147483647_i32_48 : i32 to vector<1x1xi32>
      %119 = arith.andi %117, %118 : vector<1x1xi32>
      %120 = arith.xori %97, %119 : vector<1x1xi32>
      %121 = tpu.bitcast %120 : vector<1x1xi32> -> vector<1x1xf32>
      %c0_i32_49 = arith.constant 0 : i32
      %122 = vector.broadcast %c0_i32_49 : i32 to vector<1x128xi32>
      %c0_i32_50 = arith.constant 0 : i32
      %123 = vector.broadcast %c0_i32_50 : i32 to vector<1x128xi32>
      %c0_i32_51 = arith.constant 0 : i32
      %124 = vector.broadcast %c0_i32_51 : i32 to vector<1x128xi32>
      %c0_i32_52 = arith.constant 0 : i32
      %125 = vector.broadcast %c0_i32_52 : i32 to vector<1x128xi32>
      %c0_i32_53 = arith.constant 0 : i32
      %c16_i32 = arith.constant 16 : i32
      %126 = arith.muli %c0_i32_53, %c16_i32 : i32
      %127 = tpu.assume_multiple %126, 16 : i32
      %128 = arith.index_cast %127 : i32 to index
      %c0_54 = arith.constant 0 : index
      %129 = vector.load %arg3[%128, %c0_54] : memref<16x128xf32, #tpu.memory_space<vmem>>, vector<16x128xf32>
      %130 = vector.broadcast %103 : vector<1x1xf32> to vector<16x128xf32>
      %131 = arith.cmpf ole, %129, %130 : vector<16x128xf32>
      %132 = arith.extui %131 : vector<16x128xi1> to vector<16x128xi32>
      %cst_55 = arith.constant dense<0> : vector<128xi32>
      %133 = vector.multi_reduction <add>, %132, %cst_55 [0] : vector<16x128xi32> to vector<128xi32>
      %134 = vector.shape_cast %133 : vector<128xi32> to vector<1x128xi32>
      %135 = arith.addi %122, %134 : vector<1x128xi32>
      %136 = vector.broadcast %109 : vector<1x1xf32> to vector<16x128xf32>
      %137 = arith.cmpf ole, %129, %136 : vector<16x128xf32>
      %138 = arith.extui %137 : vector<16x128xi1> to vector<16x128xi32>
      %cst_56 = arith.constant dense<0> : vector<128xi32>
      %139 = vector.multi_reduction <add>, %138, %cst_56 [0] : vector<16x128xi32> to vector<128xi32>
      %140 = vector.shape_cast %139 : vector<128xi32> to vector<1x128xi32>
      %141 = arith.addi %123, %140 : vector<1x128xi32>
      %142 = vector.broadcast %115 : vector<1x1xf32> to vector<16x128xf32>
      %143 = arith.cmpf ole, %129, %142 : vector<16x128xf32>
      %144 = arith.extui %143 : vector<16x128xi1> to vector<16x128xi32>
      %cst_57 = arith.constant dense<0> : vector<128xi32>
      %145 = vector.multi_reduction <add>, %144, %cst_57 [0] : vector<16x128xi32> to vector<128xi32>
      %146 = vector.shape_cast %145 : vector<128xi32> to vector<1x128xi32>
      %147 = arith.addi %124, %146 : vector<1x128xi32>
      %148 = vector.broadcast %121 : vector<1x1xf32> to vector<16x128xf32>
      %149 = arith.cmpf ole, %129, %148 : vector<16x128xf32>
      %150 = arith.extui %149 : vector<16x128xi1> to vector<16x128xi32>
      %cst_58 = arith.constant dense<0> : vector<128xi32>
      %151 = vector.multi_reduction <add>, %150, %cst_58 [0] : vector<16x128xi32> to vector<128xi32>
      %152 = vector.shape_cast %151 : vector<128xi32> to vector<1x128xi32>
      %153 = arith.addi %125, %152 : vector<1x128xi32>
      %c1_i32_59 = arith.constant 1 : i32
      %154 = vector.shape_cast %135 : vector<1x128xi32> to vector<1x1x128xi32>
      %cst_60 = arith.constant dense<0> : vector<1xi32>
      %155 = vector.multi_reduction <add>, %154, %cst_60 [1, 2] : vector<1x1x128xi32> to vector<1xi32>
      %156 = vector.shape_cast %155 : vector<1xi32> to vector<1x1x1xi32>
      %157 = vector.extract %156[0, 0, 0] : i32 from vector<1x1x1xi32>
      %158 = vector.broadcast %157 : i32 to vector<1x1xi32>
      %159 = vector.shape_cast %141 : vector<1x128xi32> to vector<1x1x128xi32>
      %cst_61 = arith.constant dense<0> : vector<1xi32>
      %160 = vector.multi_reduction <add>, %159, %cst_61 [1, 2] : vector<1x1x128xi32> to vector<1xi32>
      %161 = vector.shape_cast %160 : vector<1xi32> to vector<1x1x1xi32>
      %162 = vector.extract %161[0, 0, 0] : i32 from vector<1x1x1xi32>
      %163 = vector.broadcast %162 : i32 to vector<1x1xi32>
      %164 = vector.shape_cast %147 : vector<1x128xi32> to vector<1x1x128xi32>
      %cst_62 = arith.constant dense<0> : vector<1xi32>
      %165 = vector.multi_reduction <add>, %164, %cst_62 [1, 2] : vector<1x1x128xi32> to vector<1xi32>
      %166 = vector.shape_cast %165 : vector<1xi32> to vector<1x1x1xi32>
      %167 = vector.extract %166[0, 0, 0] : i32 from vector<1x1x1xi32>
      %168 = vector.broadcast %167 : i32 to vector<1x1xi32>
      %169 = vector.shape_cast %153 : vector<1x128xi32> to vector<1x1x128xi32>
      %cst_63 = arith.constant dense<0> : vector<1xi32>
      %170 = vector.multi_reduction <add>, %169, %cst_63 [1, 2] : vector<1x1x128xi32> to vector<1xi32>
      %171 = vector.shape_cast %170 : vector<1xi32> to vector<1x1x1xi32>
      %172 = vector.extract %171[0, 0, 0] : i32 from vector<1x1x1xi32>
      %173 = vector.broadcast %172 : i32 to vector<1x1xi32>
      %c103_i32 = arith.constant 103 : i32
      %174 = vector.broadcast %c103_i32 : i32 to vector<1x1xi32>
      %175 = arith.cmpi sge, %158, %174 : vector<1x1xi32>
      %176 = arith.select %175, %70, %arg12 : vector<1x1xi1>, vector<1x1xi32>
      %c1_i32_64 = arith.constant 1 : i32
      %177 = vector.broadcast %c1_i32_64 : i32 to vector<1x1xi32>
      %178 = arith.addi %70, %177 : vector<1x1xi32>
      %179 = arith.select %175, %arg8, %178 : vector<1x1xi1>, vector<1x1xi32>
      %c104_i32 = arith.constant 104 : i32
      %180 = vector.broadcast %c104_i32 : i32 to vector<1x1xi32>
      %181 = arith.cmpi sge, %163, %180 : vector<1x1xi32>
      %182 = arith.select %181, %79, %arg13 : vector<1x1xi1>, vector<1x1xi32>
      %c1_i32_65 = arith.constant 1 : i32
      %183 = vector.broadcast %c1_i32_65 : i32 to vector<1x1xi32>
      %184 = arith.addi %79, %183 : vector<1x1xi32>
      %185 = arith.select %181, %arg9, %184 : vector<1x1xi1>, vector<1x1xi32>
      %c1945_i32 = arith.constant 1945 : i32
      %186 = vector.broadcast %c1945_i32 : i32 to vector<1x1xi32>
      %187 = arith.cmpi sge, %168, %186 : vector<1x1xi32>
      %188 = arith.select %187, %88, %arg14 : vector<1x1xi1>, vector<1x1xi32>
      %c1_i32_66 = arith.constant 1 : i32
      %189 = vector.broadcast %c1_i32_66 : i32 to vector<1x1xi32>
      %190 = arith.addi %88, %189 : vector<1x1xi32>
      %191 = arith.select %187, %arg10, %190 : vector<1x1xi1>, vector<1x1xi32>
      %c1946_i32 = arith.constant 1946 : i32
      %192 = vector.broadcast %c1946_i32 : i32 to vector<1x1xi32>
      %193 = arith.cmpi sge, %173, %192 : vector<1x1xi32>
      %194 = arith.select %193, %97, %arg15 : vector<1x1xi1>, vector<1x1xi32>
      %c1_i32_67 = arith.constant 1 : i32
      %195 = vector.broadcast %c1_i32_67 : i32 to vector<1x1xi32>
      %196 = arith.addi %97, %195 : vector<1x1xi32>
      %197 = arith.select %193, %arg11, %196 : vector<1x1xi1>, vector<1x1xi32>
      scf.yield %179, %185, %191, %197, %176, %182, %188, %194 : vector<1x1xi32>, vector<1x1xi32>, vector<1x1xi32>, vector<1x1xi32>, vector<1x1xi32>, vector<1x1xi32>, vector<1x1xi32>, vector<1x1xi32>
    }
    %c31_i32 = arith.constant 31 : i32
    %10 = vector.broadcast %c31_i32 : i32 to vector<1x1xi32>
    %11 = arith.shrsi %9#4, %10 : vector<1x1xi32>
    %c2147483647_i32 = arith.constant 2147483647 : i32
    %12 = vector.broadcast %c2147483647_i32 : i32 to vector<1x1xi32>
    %13 = arith.andi %11, %12 : vector<1x1xi32>
    %14 = arith.xori %9#4, %13 : vector<1x1xi32>
    %15 = tpu.bitcast %14 : vector<1x1xi32> -> vector<1x1xf32>
    %c31_i32_6 = arith.constant 31 : i32
    %16 = vector.broadcast %c31_i32_6 : i32 to vector<1x1xi32>
    %17 = arith.shrsi %9#5, %16 : vector<1x1xi32>
    %c2147483647_i32_7 = arith.constant 2147483647 : i32
    %18 = vector.broadcast %c2147483647_i32_7 : i32 to vector<1x1xi32>
    %19 = arith.andi %17, %18 : vector<1x1xi32>
    %20 = arith.xori %9#5, %19 : vector<1x1xi32>
    %21 = tpu.bitcast %20 : vector<1x1xi32> -> vector<1x1xf32>
    %c31_i32_8 = arith.constant 31 : i32
    %22 = vector.broadcast %c31_i32_8 : i32 to vector<1x1xi32>
    %23 = arith.shrsi %9#6, %22 : vector<1x1xi32>
    %c2147483647_i32_9 = arith.constant 2147483647 : i32
    %24 = vector.broadcast %c2147483647_i32_9 : i32 to vector<1x1xi32>
    %25 = arith.andi %23, %24 : vector<1x1xi32>
    %26 = arith.xori %9#6, %25 : vector<1x1xi32>
    %27 = tpu.bitcast %26 : vector<1x1xi32> -> vector<1x1xf32>
    %c31_i32_10 = arith.constant 31 : i32
    %28 = vector.broadcast %c31_i32_10 : i32 to vector<1x1xi32>
    %29 = arith.shrsi %9#7, %28 : vector<1x1xi32>
    %c2147483647_i32_11 = arith.constant 2147483647 : i32
    %30 = vector.broadcast %c2147483647_i32_11 : i32 to vector<1x1xi32>
    %31 = arith.andi %29, %30 : vector<1x1xi32>
    %32 = arith.xori %9#7, %31 : vector<1x1xi32>
    %33 = tpu.bitcast %32 : vector<1x1xi32> -> vector<1x1xf32>
    %34 = arith.subf %21, %15 : vector<1x1xf32>
    %cst = arith.constant 3.500000e-01 : f32
    %35 = vector.broadcast %cst : f32 to vector<1x1xf32>
    %36 = arith.mulf %34, %35 : vector<1x1xf32>
    %37 = arith.addf %15, %36 : vector<1x1xf32>
    %38 = arith.subf %33, %27 : vector<1x1xf32>
    %cst_12 = arith.constant 6.500000e-01 : f32
    %39 = vector.broadcast %cst_12 : f32 to vector<1x1xf32>
    %40 = arith.mulf %38, %39 : vector<1x1xf32>
    %41 = arith.addf %27, %40 : vector<1x1xf32>
    %c0 = arith.constant 0 : index
    %c0_13 = arith.constant 0 : index
    %42 = vector.load %arg1[%c0, %c0_13] : memref<1x1xf32, #tpu.memory_space<vmem>>, vector<1x1xf32>
    %cst_14 = arith.constant 9.900000e-01 : f32
    %43 = vector.broadcast %cst_14 : f32 to vector<1x1xf32>
    %44 = arith.mulf %43, %42 : vector<1x1xf32>
    %cst_15 = arith.constant 1.000000e+00 : f32
    %cst_16 = arith.constant 9.900000e-01 : f32
    %45 = arith.subf %cst_15, %cst_16 : f32
    %46 = vector.broadcast %45 : f32 to vector<1x1xf32>
    %47 = arith.mulf %46, %37 : vector<1x1xf32>
    %48 = arith.addf %44, %47 : vector<1x1xf32>
    %c0_17 = arith.constant 0 : index
    %c0_18 = arith.constant 0 : index
    %49 = vector.load %arg2[%c0_17, %c0_18] : memref<1x1xf32, #tpu.memory_space<vmem>>, vector<1x1xf32>
    %cst_19 = arith.constant 9.900000e-01 : f32
    %50 = vector.broadcast %cst_19 : f32 to vector<1x1xf32>
    %51 = arith.mulf %50, %49 : vector<1x1xf32>
    %cst_20 = arith.constant 1.000000e+00 : f32
    %cst_21 = arith.constant 9.900000e-01 : f32
    %52 = arith.subf %cst_20, %cst_21 : f32
    %53 = vector.broadcast %52 : f32 to vector<1x1xf32>
    %54 = arith.mulf %53, %41 : vector<1x1xf32>
    %55 = arith.addf %51, %54 : vector<1x1xf32>
    %c0_22 = arith.constant 0 : index
    %c0_23 = arith.constant 0 : index
    %56 = vector.load %arg4[%c0_22, %c0_23] : memref<1x1xf32, #tpu.memory_space<vmem>>, vector<1x1xf32>
    tpu.vector_store %arg4[%c0_22, %c0_23], %48 {strides = array<i32>} : memref<1x1xf32, #tpu.memory_space<vmem>>, vector<1x1xf32>,
    %c0_24 = arith.constant 0 : index
    %c0_25 = arith.constant 0 : index
    %57 = vector.load %arg5[%c0_24, %c0_25] : memref<1x1xf32, #tpu.memory_space<vmem>>, vector<1x1xf32>
    tpu.vector_store %arg5[%c0_24, %c0_25], %55 {strides = array<i32>} : memref<1x1xf32, #tpu.memory_space<vmem>>, vector<1x1xf32>,
    %58 = arith.subf %55, %48 : vector<1x1xf32>
    %cst_26 = arith.constant 1.000000e+00 : f32
    %59 = vector.broadcast %cst_26 : f32 to vector<1x1xf32>
    %60 = arith.maximumf %59, %58 : vector<1x1xf32>
    %c0_27 = arith.constant 0 : index
    %c0_28 = arith.constant 0 : index
    %61 = vector.load %arg6[%c0_27, %c0_28] : memref<1x1xf32, #tpu.memory_space<vmem>>, vector<1x1xf32>
    tpu.vector_store %arg6[%c0_27, %c0_28], %60 {strides = array<i32>} : memref<1x1xf32, #tpu.memory_space<vmem>>, vector<1x1xf32>,
    return
  }
  func.func @transform_0(%arg0: i32) -> (i32, i32) {
    %c0_i32 = arith.constant 0 : i32
    %c0_i32_0 = arith.constant 0 : i32
    %c0_i32_1 = arith.constant 0 : i32
    return %c0_i32, %c0_i32_0 : i32, i32
  }
  func.func @transform_1(%arg0: i32) -> (i32, i32) {
    %c0_i32 = arith.constant 0 : i32
    %c0_i32_0 = arith.constant 0 : i32
    %c0_i32_1 = arith.constant 0 : i32
    return %c0_i32, %c0_i32_0 : i32, i32
  }
  func.func @transform_2(%arg0: i32) -> (i32, i32) {
    %c0_i32 = arith.constant 0 : i32
    %c0_i32_0 = arith.constant 0 : i32
    %c0_i32_1 = arith.constant 0 : i32
    return %c0_i32, %c0_i32_0 : i32, i32
  }
  func.func @transform_3(%arg0: i32) -> (i32, i32) {
    %c0_i32 = arith.constant 0 : i32
    %c0_i32_0 = arith.constant 0 : i32
    %c0_i32_1 = arith.constant 0 : i32
    return %c0_i32, %c0_i32_0 : i32, i32
  }
  func.func @transform_4(%arg0: i32) -> (i32, i32) {
    %c0_i32 = arith.constant 0 : i32
    %c0_i32_0 = arith.constant 0 : i32
    %c0_i32_1 = arith.constant 0 : i32
    return %c0_i32, %c0_i32_0 : i32, i32
  }
  func.func @transform_5(%arg0: i32) -> (i32, i32) {
    %c0_i32 = arith.constant 0 : i32
    %c0_i32_0 = arith.constant 0 : i32
    %c0_i32_1 = arith.constant 0 : i32
    return %c0_i32, %c0_i32_0 : i32, i32
  }
}

</mosaic_0001>

<llo_original>
// kernel: tpu_custom_call.1
$region0: #{tpu_custom_call.1}
  #allocation0 [shape = 'u32[]', space=smem, size = 0x4, offset = 0x4, fixed_abs, tag = 'smem constant byte address 0x4 - core index']
  #allocation1 [shape = 'u32[144,128]{1,0:T(1,128)}', space=vmem, size = 0x12000, scoped, tag = 'internal scratch']
  #allocation2 [shape = 'f32[1,1]{1,0:T(1,128)S(1)}', space=vmem, size = 0x200, scoped, tag = 'scoped memory for tpu_custom_call.1']
  #allocation3 [shape = 'f32[1,1]{1,0:T(1,128)S(1)}', space=vmem, size = 0x200, scoped, tag = 'scoped memory for tpu_custom_call.1']
  %s0 = inlined_call_operand.<no memory space> [shape: f32[1,1], index: 0, kind: input, shape index: {}]
  %s1 = inlined_call_operand.<no memory space> [shape: f32[1,1], index: 1, kind: input, shape index: {}]
  %s2 = inlined_call_operand.hbm [shape: f32[16,128], index: 2, kind: input, shape index: {}]
  %s3 = inlined_call_operand.hbm [shape: f32[1,1], index: 3, kind: output, shape index: {0}]
  %s4 = inlined_call_operand.hbm [shape: f32[1,1], index: 4, kind: output, shape index: {1}]
  %s5 = inlined_call_operand.hbm [shape: f32[1,1], index: 5, kind: output, shape index: {2}]
  %6 = xla_tuple %s3, %s4, %s5
  %s7 = sld [smem:[#allocation0]]
  $region49: #{tpu_custom_call.1} parent=0
    _
  %s9 = ssub.s32 1, %s7
  %s10 = scalar_select 0, %s9, %s7
  %v11 = vstv %s0
  %12 = vst [vmem:[#allocation2] sm:$0x1] %v11
  %v13 = vstv %s1
  %14 = vst [vmem:[#allocation3] sm:$0x1] %v13
  $region1: #{tpu_custom_call.1} parent=0
    #allocation4 [shape = 'u8[8192]{0}', space=vmem, size = 0x2000, scoped, tag = 'input window, operand 2, single buffered']
    #allocation5 [shape = 's32[1]{0}', space=sflag, size = 0x4, scoped, tag = 'scoped memory for tpu_custom_call.1']
    #allocation6 [shape = 's32[1]{0}', space=sflag, size = 0x4, scoped, tag = 'scoped memory for tpu_custom_call.1']
    #allocation7 [shape = 'u8[512]{0}', space=vmem, size = 0x400, scoped, tag = 'output window, operand 0, single buffered']
    #allocation8 [shape = 'u8[512]{0}', space=vmem, size = 0x400, scoped, tag = 'output window, operand 1, single buffered']
    #allocation9 [shape = 's32[1]{0}', space=sflag, size = 0x4, scoped, tag = 'scoped memory for tpu_custom_call.1']
    #allocation10 [shape = 'u8[512]{0}', space=vmem, size = 0x400, scoped, tag = 'output window, operand 2, single buffered']
    %15 = vsyncpa [#allocation5], 0
    %16 = vsyncpa [#allocation6], 0
    %17 = vsyncpa [#allocation9], 0
    // Predicated region
    $region2: #{tpu_custom_call.1} parent=1 // pred_check
      _
    $region3: #{tpu_custom_call.1} parent=1 // pred_check_branch
      %19 = sbr.rel (0) target = $region5
    $region4: #{tpu_custom_call.1} parent=1 // pred_region
      _
    $region5: #{tpu_custom_call.1} parent=1 // pred_fallthru
      _
    // Predicated region
    $region6: #{tpu_custom_call.1} parent=1 // pred_check
      _
    $region7: #{tpu_custom_call.1} parent=1 // pred_check_branch
      %21 = sbr.rel (0) target = $region9
    $region8: #{tpu_custom_call.1} parent=1 // pred_region
      _
    $region9: #{tpu_custom_call.1} parent=1 // pred_fallthru
      _
    // Predicated region
    $region10: #{tpu_custom_call.1} parent=1 // pred_check
      _
    $region11: #{tpu_custom_call.1} parent=1 // pred_check_branch
      %23 = sbr.rel (0) target = $region13
    $region12: #{tpu_custom_call.1} parent=1 // pred_region
      %s25 = ssub.s32 256, 256
      %26 = vsyncadd [#allocation5], %s25
      %s27 = sshll.u32 [#allocation4], 4
      %s28 = int_to_ptr.vmem [resolvable:$true] %s27
      %33 = dma.hbm_to_vmem [thread:$0]  %s2, 256, %s28, [#allocation5], 128, 128, 8
    $region13: #{tpu_custom_call.1} parent=1 // pred_fallthru
      _
    // Predicated region
    $region14: #{tpu_custom_call.1} parent=1 // pred_check
      _
    $region15: #{tpu_custom_call.1} parent=1 // pred_check_branch
      %35 = sbr.rel (0) target = $region17
    $region16: #{tpu_custom_call.1} parent=1 // pred_region
      %36 = dma.done [#allocation5], 256
    $region17: #{tpu_custom_call.1} parent=1 // pred_fallthru
      _
    loop: start=0, step=1, limit=32
    $region18: #{tpu_custom_call.1} parent=1 // loop_pre_header
      _
    $region19: #{tpu_custom_call.1} parent=1 // loop_header
      %s38 = sphi 0, %s42
      %p39 = scmp.ge.s32.totalorder %s38, 32
      %v43 = vphi 2155872255, %v196
      %v44 = vphi 2155872255, %v200
      %v45 = vphi 2155872255, %v204
      %v46 = vphi 2155872255, %v208
      %v47 = vphi 2139095040, %v194
      %v48 = vphi 2139095040, %v198
      %v49 = vphi 2139095040, %v202
      %v50 = vphi 2139095040, %v206
    $region20: #{tpu_custom_call.1} parent=1 // loop_header_branch
      %41 = sbr.rel (%p39) target = $region24
    $region21: #{tpu_custom_call.1} parent=1 // loop_body
      %v51 = vshra.s32 %v43, 1
      %v52 = vshra.s32 %v47, 1
      %v53 = vadd.s32 %v51, %v52
      %v54 = vand.u32 %v43, %v47
      %v55 = vand.u32 %v54, 1
      %v56 = vadd.s32 %v53, %v55
      %v57 = vshra.s32 %v44, 1
      %v58 = vshra.s32 %v48, 1
      %v59 = vadd.s32 %v57, %v58
      %v60 = vand.u32 %v44, %v48
      %v61 = vand.u32 %v60, 1
      %v62 = vadd.s32 %v59, %v61
      %v63 = vshra.s32 %v45, 1
      %v64 = vshra.s32 %v49, 1
      %v65 = vadd.s32 %v63, %v64
      %v66 = vand.u32 %v45, %v49
      %v67 = vand.u32 %v66, 1
      %v68 = vadd.s32 %v65, %v67
      %v69 = vshra.s32 %v46, 1
      %v70 = vshra.s32 %v50, 1
      %v71 = vadd.s32 %v69, %v70
      %v72 = vand.u32 %v46, %v50
      %v73 = vand.u32 %v72, 1
      %v74 = vadd.s32 %v71, %v73
      %v75 = vshra.s32 %v56, 31
      %v76 = vand.u32 %v75, 2147483647
      %v77 = vxor.u32 %v56, %v76
      %v79 = vshra.s32 %v62, 31
      %v80 = vand.u32 %v79, 2147483647
      %v81 = vxor.u32 %v62, %v80
      %v83 = vshra.s32 %v68, 31
      %v84 = vand.u32 %v83, 2147483647
      %v85 = vxor.u32 %v68, %v84
      %v87 = vshra.s32 %v74, 31
      %v88 = vand.u32 %v87, 2147483647
      %v89 = vxor.u32 %v74, %v88
      %v91 = vld [vmem:[#allocation4] sm:$0xff]
      %v92 = vld [vmem:[#allocation4 + $0x8] sm:$0xff]
      %vm93 = vcmp.le.f32.partialorder %v91, %v77
      %vm94 = vcmp.le.f32.partialorder %v92, %v77
      %v95 = vsel %vm93, 1, 0
      %v96 = vsel %vm94, 1, 0
      %v97 = vadd.s32 %v95, %v96
      %v98 = vrot.slane %v97, 4
      %v99 = vadd.s32 %v97, %v98
      %v100 = vrot.slane %v99, 2
      %v101 = vadd.s32 %v99, %v100
      %v102 = vrot.slane %v101, 1
      %v103 = vadd.s32 %v101, %v102
      %vm104 = vcmp.le.f32.partialorder %v91, %v81
      %vm105 = vcmp.le.f32.partialorder %v92, %v81
      %v106 = vsel %vm104, 1, 0
      %v107 = vsel %vm105, 1, 0
      %v108 = vadd.s32 %v106, %v107
      %v109 = vrot.slane %v108, 4
      %v110 = vadd.s32 %v108, %v109
      %v111 = vrot.slane %v110, 2
      %v112 = vadd.s32 %v110, %v111
      %v113 = vrot.slane %v112, 1
      %v114 = vadd.s32 %v112, %v113
      %vm115 = vcmp.le.f32.partialorder %v91, %v85
      %vm116 = vcmp.le.f32.partialorder %v92, %v85
      %v117 = vsel %vm115, 1, 0
      %v118 = vsel %vm116, 1, 0
      %v119 = vadd.s32 %v117, %v118
      %v120 = vrot.slane %v119, 4
      %v121 = vadd.s32 %v119, %v120
      %v122 = vrot.slane %v121, 2
      %v123 = vadd.s32 %v121, %v122
      %v124 = vrot.slane %v123, 1
      %v125 = vadd.s32 %v123, %v124
      %vm126 = vcmp.le.f32.partialorder %v91, %v89
      %vm127 = vcmp.le.f32.partialorder %v92, %v89
      %v128 = vsel %vm126, 1, 0
      %v129 = vsel %vm127, 1, 0
      %v130 = vadd.s32 %v128, %v129
      %v131 = vrot.slane %v130, 4
      %v132 = vadd.s32 %v130, %v131
      %v133 = vrot.slane %v132, 2
      %v134 = vadd.s32 %v132, %v133
      %v135 = vrot.slane %v134, 1
      %v136 = vadd.s32 %v134, %v135
      %v137 = vand.u32 %v103, 65535
      %v138 = vshrl.u32 %v103, 16
      %v139 = vcvt.s32.f32 %v137
      %v140 = vcvt.s32.f32 %v138
      %141 = vadd.xlane.f32.xlu0 %v139
      %v142 = vpop.xlane.xlu0 %141
      %143 = vadd.xlane.f32.xlu0 %v140
      %v144 = vpop.xlane.xlu0 %143
      %v145 = vcvt.f32.s32 %v142
      %v146 = vcvt.f32.s32 %v144
      %v147 = vshll.u32 %v146, 16
      %v148 = vadd.s32 %v147, %v145
      %s149 = vtos %v148
      %v150 = vstv %s149
      %v151 = vand.u32 %v114, 65535
      %v152 = vshrl.u32 %v114, 16
      %v153 = vcvt.s32.f32 %v151
      %v154 = vcvt.s32.f32 %v152
      %155 = vadd.xlane.f32.xlu0 %v153
      %v156 = vpop.xlane.xlu0 %155
      %157 = vadd.xlane.f32.xlu0 %v154
      %v158 = vpop.xlane.xlu0 %157
      %v159 = vcvt.f32.s32 %v156
      %v160 = vcvt.f32.s32 %v158
      %v161 = vshll.u32 %v160, 16
      %v162 = vadd.s32 %v161, %v159
      %s163 = vtos %v162
      %v164 = vstv %s163
      %v165 = vand.u32 %v125, 65535
      %v166 = vshrl.u32 %v125, 16
      %v167 = vcvt.s32.f32 %v165
      %v168 = vcvt.s32.f32 %v166
      %169 = vadd.xlane.f32.xlu0 %v167
      %v170 = vpop.xlane.xlu0 %169
      %171 = vadd.xlane.f32.xlu0 %v168
      %v172 = vpop.xlane.xlu0 %171
      %v173 = vcvt.f32.s32 %v170
      %v174 = vcvt.f32.s32 %v172
      %v175 = vshll.u32 %v174, 16
      %v176 = vadd.s32 %v175, %v173
      %s177 = vtos %v176
      %v178 = vstv %s177
      %v179 = vand.u32 %v136, 65535
      %v180 = vshrl.u32 %v136, 16
      %v181 = vcvt.s32.f32 %v179
      %v182 = vcvt.s32.f32 %v180
      %183 = vadd.xlane.f32.xlu0 %v181
      %v184 = vpop.xlane.xlu0 %183
      %185 = vadd.xlane.f32.xlu0 %v182
      %v186 = vpop.xlane.xlu0 %185
      %v187 = vcvt.f32.s32 %v184
      %v188 = vcvt.f32.s32 %v186
      %v189 = vshll.u32 %v188, 16
      %v190 = vadd.s32 %v189, %v187
      %s191 = vtos %v190
      %v192 = vstv %s191
      %vm193 = vcmp.ge.s32.totalorder %v150, 103
      %v194 = vsel %vm193, %v56, %v47
      %v195 = vadd.s32 %v56, 1
      %v196 = vsel %vm193, %v43, %v195
      %vm197 = vcmp.ge.s32.totalorder %v164, 104
      %v198 = vsel %vm197, %v62, %v48
      %v199 = vadd.s32 %v62, 1
      %v200 = vsel %vm197, %v44, %v199
      %vm201 = vcmp.ge.s32.totalorder %v178, 1945
      %v202 = vsel %vm201, %v68, %v49
      %v203 = vadd.s32 %v68, 1
      %v204 = vsel %vm201, %v45, %v203
      %vm205 = vcmp.ge.s32.totalorder %v192, 1946
      %v206 = vsel %vm205, %v74, %v50
      %v207 = vadd.s32 %v74, 1
      %v208 = vsel %vm205, %v46, %v207
    $region22: #{tpu_custom_call.1} parent=1 // loop_footer
      %s42 = sadd.s32 1, %s38
    $region23: #{tpu_custom_call.1} parent=1 // loop_footer_branch
      %37 = sbr.rel target = $region19
    $region24: #{tpu_custom_call.1} parent=1 // loop_exit
      _
    %v209 = vshra.s32 %v47, 31
    %v210 = vand.u32 %v209, 2147483647
    %v211 = vxor.u32 %v47, %v210
    %v213 = vshra.s32 %v48, 31
    %v214 = vand.u32 %v213, 2147483647
    %v215 = vxor.u32 %v48, %v214
    %v217 = vshra.s32 %v49, 31
    %v218 = vand.u32 %v217, 2147483647
    %v219 = vxor.u32 %v49, %v218
    %v221 = vshra.s32 %v50, 31
    %v222 = vand.u32 %v221, 2147483647
    %v223 = vxor.u32 %v50, %v222
    %v225 = vsub.f32 %v215, %v211
    %v226 = vmul.f32 %v225, 0.35
    %v227 = vadd.f32 %v211, %v226
    %v228 = vsub.f32 %v223, %v219
    %v229 = vmul.f32 %v228, 0.65
    %v230 = vadd.f32 %v219, %v229
    %v231 = vld [vmem:[#allocation2] sm:$0x1]
    %v232 = vmul.f32 %v231, 0.99
    %v233 = vmul.f32 %v227, 0.00999999
    %v234 = vadd.f32 %v232, %v233
    %v235 = vld [vmem:[#allocation3] sm:$0x1]
    %v236 = vmul.f32 %v235, 0.99
    %v237 = vmul.f32 %v230, 0.00999999
    %v238 = vadd.f32 %v236, %v237
    %vm239 = vcmask 0
    %240 = vst.msk [vmem:[#allocation7] sm:$0x1] %vm239, %v234
    %241 = vst.msk [vmem:[#allocation8] sm:$0x1] %vm239, %v238
    %v242 = vsub.f32 %v238, %v234
    %v243 = vmax.f32 %v242, 1.0
    %244 = vst.msk [vmem:[#allocation10] sm:$0x1] %vm239, %v243
    // Predicated region
    $region25: #{tpu_custom_call.1} parent=1 // pred_check
      _
    $region26: #{tpu_custom_call.1} parent=1 // pred_check_branch
      %246 = sbr.rel (0) target = $region28
    $region27: #{tpu_custom_call.1} parent=1 // pred_region
      %s248 = ssub.s32 16, 16
      %249 = vsyncadd [#allocation6], %s248
      %s251 = sshll.u32 [#allocation7], 4
      %s252 = int_to_ptr.vmem [resolvable:$true] %s251
      %254 = dma.vmem_to_hbm [thread:$0]  %s252, 16, %s3, [#allocation6]
    $region28: #{tpu_custom_call.1} parent=1 // pred_fallthru
      _
    // Predicated region
    $region29: #{tpu_custom_call.1} parent=1 // pred_check
      _
    $region30: #{tpu_custom_call.1} parent=1 // pred_check_branch
      %256 = sbr.rel (0) target = $region32
    $region31: #{tpu_custom_call.1} parent=1 // pred_region
      %s258 = ssub.s32 16, 16
      %259 = vsyncadd [#allocation9], %s258
      %s261 = sshll.u32 [#allocation8], 4
      %s262 = int_to_ptr.vmem [resolvable:$true] %s261
      %264 = dma.vmem_to_hbm [thread:$0]  %s262, 16, %s4, [#allocation9]
    $region32: #{tpu_custom_call.1} parent=1 // pred_fallthru
      _
    // Predicated region
    $region33: #{tpu_custom_call.1} parent=1 // pred_check
      _
    $region34: #{tpu_custom_call.1} parent=1 // pred_check_branch
      %266 = sbr.rel (0) target = $region36
    $region35: #{tpu_custom_call.1} parent=1 // pred_region
      %s268 = ssub.s32 16, 16
      %269 = vsyncadd [#allocation9], %s268
      %s271 = sshll.u32 [#allocation10], 4
      %s272 = int_to_ptr.vmem [resolvable:$true] %s271
      %274 = dma.vmem_to_hbm [thread:$0]  %s272, 16, %s5, [#allocation9]
    $region36: #{tpu_custom_call.1} parent=1 // pred_fallthru
      _
    // Predicated region
    $region37: #{tpu_custom_call.1} parent=1 // pred_check
      _
    $region38: #{tpu_custom_call.1} parent=1 // pred_check_branch
      %276 = sbr.rel (0) target = $region40
    $region39: #{tpu_custom_call.1} parent=1 // pred_region
      %277 = dma.done [#allocation6], 16
    $region40: #{tpu_custom_call.1} parent=1 // pred_fallthru
      _
    // Predicated region
    $region41: #{tpu_custom_call.1} parent=1 // pred_check
      _
    $region42: #{tpu_custom_call.1} parent=1 // pred_check_branch
      %279 = sbr.rel (0) target = $region44
    $region43: #{tpu_custom_call.1} parent=1 // pred_region
      %280 = dma.done [#allocation9], 16
    $region44: #{tpu_custom_call.1} parent=1 // pred_fallthru
      _
    // Predicated region
    $region45: #{tpu_custom_call.1} parent=1 // pred_check
      _
    $region46: #{tpu_custom_call.1} parent=1 // pred_check_branch
      %282 = sbr.rel (0) target = $region48
    $region47: #{tpu_custom_call.1} parent=1 // pred_region
      %283 = dma.done [#allocation9], 16
    $region48: #{tpu_custom_call.1} parent=1 // pred_fallthru
      _
    %284 = vsyncpa [#allocation5], 1
    %285 = vsyncpa [#allocation6], 1
    %286 = vsyncpa [#allocation9], 1

</llo_original>
